<compile_context>
chip_gen: v5e
topology: v5e:2x2
jax: 0.10.0
libtpu: 0.0.40
codegen_flags: <defaults>
</compile_context>

<pallas_src>
import functools

import jax
import jax.numpy as jnp
from jax.experimental import pallas as pl


def _gru_fc_kernel(x_ref, w_i_ref, b_i_ref, w_h_ref, b_hn_ref,
                   w_fc_ref, b_fc_ref, z_ref, q_ref, *, T, B, H):
    # Batched input projection for ALL timesteps at once:
    #   gi = x_flat @ W_i + [b_ir + b_hr, b_iz + b_hz, b_in]   -> (T*B, 3H)
    gi = (jnp.dot(x_ref[...], w_i_ref[...], preferred_element_type=jnp.float32)
          + b_i_ref[...])

    w_h = w_h_ref[...]                                          # (H, 3H)
    # Hoist the (1,H)->(B,H) broadcast out of the serial loop (JAX does not
    # CSE broadcast_in_dim, so it would be re-emitted T times otherwise).
    b_hn_b = jnp.broadcast_to(b_hn_ref[...], (B, H))

    h = jnp.zeros((B, H), jnp.float32)
    # Serial recurrence: one fused (B,H)@(H,3H) MXU matmul per step.  The
    # kernel is latency-bound, so the T-step loop stays fully unrolled inside
    # a single invocation (no grid steps, no extra pipelining).
    for t in range(T):
        gi_t = gi[t * B:(t + 1) * B, :]                             # (B, 3H)
        gh = jnp.dot(h, w_h, preferred_element_type=jnp.float32)    # (B, 3H)
        # r and z computed with a single EUP sigmoid push on one (B, 2H) slab.
        rz = jax.nn.sigmoid(gi_t[:, 0:2 * H] + gh[:, 0:2 * H])
        r = rz[:, 0:H]
        zg = rz[:, H:2 * H]
        n = jnp.tanh(gi_t[:, 2 * H:3 * H] + r * (gh[:, 2 * H:3 * H] + b_hn_b))
        h = n + zg * (h - n)                 # == (1 - zg) * n + zg * h
        # Per-step tile-aligned (B-row) store straight into the output buffer.
        q_ref[t * B:(t + 1) * B, :] = h

    # FC head + softplus(beta=10, threshold=20) over all timesteps at once.
    # W_fc / b_fc were zero-padded to a 128-lane output width in the wrapper,
    # so the z store below is a single lane-dense (unmasked) bulk store.
    q = q_ref[...]                                                  # (T*B, H)
    v = (jnp.dot(q, w_fc_ref[...], preferred_element_type=jnp.float32)
         + b_fc_ref[...])                                           # (T*B, ZP)
    beta = 10.0
    s = beta * v
    sp = jnp.where(s > 20.0, v, jnp.log1p(jnp.exp(jnp.minimum(s, 20.0))) / beta)
    z_ref[...] = sp


def _fuse_params(params, zp):
    """Fuse/pad GRU + FC weights ONCE at setup time (gate order r, z, n)."""
    w_i = jnp.concatenate([params["w_ir"], params["w_iz"], params["w_in"]],
                          axis=1)                                   # (NN1, 3H)
    b_i = jnp.concatenate([params["b_ir"] + params["b_hr"],
                           params["b_iz"] + params["b_hz"],
                           params["b_in"]], axis=1)                 # (1, 3H)
    w_h = jnp.concatenate([params["w_hr"], params["w_hz"], params["w_hn"]],
                          axis=1)                                   # (H, 3H)
    b_hn = params["b_hn"]                                           # (1, H)
    nn2 = params["w_fc"].shape[1]
    w_fc_pad = jnp.pad(params["w_fc"], ((0, 0), (0, zp - nn2)))     # (H, ZP)
    b_fc_pad = jnp.pad(params["b_fc"], ((0, 0), (0, zp - nn2)))     # (1, ZP)
    return (w_i, b_i, w_h, b_hn, w_fc_pad, b_fc_pad)


def make_rnn0_forward(params):
    """Pre-fuses weights once and returns a jitted forward: x -> (z, q)."""
    H = params["w_hr"].shape[0]
    NN2 = params["w_fc"].shape[1]
    ZP = ((NN2 + 127) // 128) * 128          # lane-dense padded z width
    fused = _fuse_params(params, ZP)

    @jax.jit
    def forward(x):
        T, B, NN1 = x.shape
        x_flat = x.reshape(T * B, NN1)
        kernel = functools.partial(_gru_fc_kernel, T=T, B=B, H=H)
        z_pad, q_flat = pl.pallas_call(
            kernel,
            out_shape=(
                jax.ShapeDtypeStruct((T * B, ZP), jnp.float32),
                jax.ShapeDtypeStruct((T * B, H), jnp.float32),
            ),
            # Everything is KB-scale; whole arrays live in VMEM for a single
            # invocation (no grid -> no per-step pipeline/DMA overhead).
            # TODO(synk): for production-sized T*B add a 'parallel' grid axis
            # over batch (uses both TCs on v7x) with batch-tiled BlockSpecs
            # and set vmem_limit_bytes explicitly (v7x: 64 MiB physical /
            # 32 MiB default scoped).
        )(x_flat, *fused)
        z = z_pad[:, :NN2].reshape(T, B, NN2)
        q = q_flat.reshape(T, B, H)
        return z, q

    return forward


def rnn0_reference(x, p):
    """Pure-JAX reference (lax.scan) for validation."""
    H = p["w_hr"].shape[0]

    def step(h, x_t):
        gi_r = x_t @ p["w_ir"] + p["b_ir"]
        gi_z = x_t @ p["w_iz"] + p["b_iz"]
        gi_n = x_t @ p["w_in"] + p["b_in"]
        gh_r = h @ p["w_hr"] + p["b_hr"]
        gh_z = h @ p["w_hz"] + p["b_hz"]
        gh_n = h @ p["w_hn"] + p["b_hn"]
        r = jax.nn.sigmoid(gi_r + gh_r)
        zg = jax.nn.sigmoid(gi_z + gh_z)
        n = jnp.tanh(gi_n + r * gh_n)
        h_new = (1.0 - zg) * n + zg * h
        return h_new, h_new

    h0 = jnp.zeros((x.shape[1], H), jnp.float32)
    _, q = jax.lax.scan(step, h0, x)
    v = q @ p["w_fc"] + p["b_fc"]
    s = 10.0 * v
    z = jnp.where(s > 20.0, v, jnp.log1p(jnp.exp(jnp.minimum(s, 20.0))) / 10.0)
    return z, q


if __name__ == "__main__":
    # Small shapes: seq T=8, batch B=8, input NN1=16, hidden ncomp=32, out NN2=24.
    T, B, NN1, H, NN2 = 8, 8, 16, 32, 24

    key = jax.random.PRNGKey(0)
    keys = jax.random.split(key, 16)
    bound = 1.0 / float(jnp.sqrt(H))

    def u(kk, shape):
        return jax.random.uniform(kk, shape, jnp.float32, -bound, bound)

    params = dict(
        w_ir=u(keys[0], (NN1, H)), w_iz=u(keys[1], (NN1, H)), w_in=u(keys[2], (NN1, H)),
        w_hr=u(keys[3], (H, H)), w_hz=u(keys[4], (H, H)), w_hn=u(keys[5], (H, H)),
        b_ir=u(keys[6], (1, H)), b_iz=u(keys[7], (1, H)), b_in=u(keys[8], (1, H)),
        b_hr=u(keys[9], (1, H)), b_hz=u(keys[10], (1, H)), b_hn=u(keys[11], (1, H)),
        w_fc=u(keys[12], (H, NN2)), b_fc=u(keys[13], (1, NN2)),
    )
    x = jax.random.normal(keys[14], (T, B, NN1), jnp.float32)

    forward = make_rnn0_forward(params)   # weights fused/padded once here
    z, q = forward(x)
    jax.block_until_ready((z, q))

    z_ref, q_ref = rnn0_reference(x, params)
    assert z.shape == (T, B, NN2) and q.shape == (T, B, H)
    assert jnp.allclose(q, q_ref, atol=1e-5, rtol=1e-5), "q mismatch"
    assert jnp.allclose(z, z_ref, atol=1e-5, rtol=1e-5), "z mismatch"

    print("KERNEL_OK")
</pallas_src>

<mosaic_0001>
module attributes {stable_mosaic.version = 11 : i64} {
  func.func @_gru_fc_kernel(%arg0: memref<64x16xf32, #tpu.memory_space<vmem>>, %arg1: memref<16x96xf32, #tpu.memory_space<vmem>>, %arg2: memref<1x96xf32, #tpu.memory_space<vmem>>, %arg3: memref<32x96xf32, #tpu.memory_space<vmem>>, %arg4: memref<1x32xf32, #tpu.memory_space<vmem>>, %arg5: memref<32x128xf32, #tpu.memory_space<vmem>>, %arg6: memref<1x128xf32, #tpu.memory_space<vmem>>, %arg7: memref<64x128xf32, #tpu.memory_space<vmem>>, %arg8: memref<64x32xf32, #tpu.memory_space<vmem>>) attributes {dimension_semantics = [], scalar_prefetch = 0 : i64, scratch_operands = 0 : i64, tpu.core_type = #tpu.core_type<tc>} {
    %c0 = arith.constant 0 : index
    %c0_0 = arith.constant 0 : index
    %0 = vector.load %arg0[%c0, %c0_0] : memref<64x16xf32, #tpu.memory_space<vmem>>, vector<64x16xf32>
    %c0_1 = arith.constant 0 : index
    %c0_2 = arith.constant 0 : index
    %1 = vector.load %arg1[%c0_1, %c0_2] : memref<16x96xf32, #tpu.memory_space<vmem>>, vector<16x96xf32>
    %cst = arith.constant dense<0.000000e+00> : vector<64x96xf32>
    %2 = tpu.matmul %0, %1, %cst {dimension_numbers = #tpu.dot_dimension_numbers<[1], [0], [0], [1], [0, 0, 1, 1], [], []>} : vector<64x16xf32>, vector<16x96xf32>, vector<64x96xf32> -> vector<64x96xf32>
    %c0_3 = arith.constant 0 : index
    %c0_4 = arith.constant 0 : index
    %3 = vector.load %arg2[%c0_3, %c0_4] : memref<1x96xf32, #tpu.memory_space<vmem>>, vector<1x96xf32>
    %4 = vector.broadcast %3 : vector<1x96xf32> to vector<64x96xf32>
    %5 = arith.addf %2, %4 : vector<64x96xf32>
    %c0_5 = arith.constant 0 : index
    %c0_6 = arith.constant 0 : index
    %6 = vector.load %arg3[%c0_5, %c0_6] : memref<32x96xf32, #tpu.memory_space<vmem>>, vector<32x96xf32>
    %c0_7 = arith.constant 0 : index
    %c0_8 = arith.constant 0 : index
    %7 = vector.load %arg4[%c0_7, %c0_8] : memref<1x32xf32, #tpu.memory_space<vmem>>, vector<1x32xf32>
    %8 = vector.shape_cast %7 : vector<1x32xf32> to vector<1x32xf32>
    %9 = vector.broadcast %8 : vector<1x32xf32> to vector<8x32xf32>
    %cst_9 = arith.constant 0.000000e+00 : f32
    %10 = vector.broadcast %cst_9 : f32 to vector<8x32xf32>
    %11 = vector.extract_strided_slice %5 {offsets = [0, 0], sizes = [8, 96], strides = [1, 1]} : vector<64x96xf32> to vector<8x96xf32>
    %cst_10 = arith.constant dense<0.000000e+00> : vector<8x96xf32>
    %12 = tpu.matmul %10, %6, %cst_10 {dimension_numbers = #tpu.dot_dimension_numbers<[1], [0], [0], [1], [0, 0, 1, 1], [], []>} : vector<8x32xf32>, vector<32x96xf32>, vector<8x96xf32> -> vector<8x96xf32>
    %13 = vector.extract_strided_slice %11 {offsets = [0, 0], sizes = [8, 64], strides = [1, 1]} : vector<8x96xf32> to vector<8x64xf32>
    %14 = vector.extract_strided_slice %12 {offsets = [0, 0], sizes = [8, 64], strides = [1, 1]} : vector<8x96xf32> to vector<8x64xf32>
    %15 = arith.addf %13, %14 : vector<8x64xf32>
    %16 = arith.negf %15 : vector<8x64xf32>
    %17 = math.exp %16 : vector<8x64xf32>
    %cst_11 = arith.constant 1.000000e+00 : f32
    %18 = vector.broadcast %cst_11 : f32 to vector<8x64xf32>
    %19 = arith.addf %18, %17 : vector<8x64xf32>
    %20 = arith.divf %18, %19 : vector<8x64xf32>
    %21 = vector.extract_strided_slice %20 {offsets = [0, 0], sizes = [8, 32], strides = [1, 1]} : vector<8x64xf32> to vector<8x32xf32>
    %22 = vector.extract_strided_slice %20 {offsets = [0, 32], sizes = [8, 32], strides = [1, 1]} : vector<8x64xf32> to vector<8x32xf32>
    %23 = vector.extract_strided_slice %11 {offsets = [0, 64], sizes = [8, 32], strides = [1, 1]} : vector<8x96xf32> to vector<8x32xf32>
    %24 = vector.extract_strided_slice %12 {offsets = [0, 64], sizes = [8, 32], strides = [1, 1]} : vector<8x96xf32> to vector<8x32xf32>
    %25 = arith.addf %24, %9 : vector<8x32xf32>
    %26 = arith.mulf %21, %25 : vector<8x32xf32>
    %27 = arith.addf %23, %26 : vector<8x32xf32>
    %28 = math.tanh %27 : vector<8x32xf32>
    %29 = arith.subf %10, %28 : vector<8x32xf32>
    %30 = arith.mulf %22, %29 : vector<8x32xf32>
    %31 = arith.addf %28, %30 : vector<8x32xf32>
    %c0_12 = arith.constant 0 : index
    %c0_13 = arith.constant 0 : index
    %32 = vector.load %arg8[%c0_12, %c0_13] : memref<64x32xf32, #tpu.memory_space<vmem>>, vector<8x32xf32>
    tpu.vector_store %arg8[%c0_12, %c0_13], %31 {strides = array<i32>} : memref<64x32xf32, #tpu.memory_space<vmem>>, vector<8x32xf32>,
    %33 = vector.extract_strided_slice %5 {offsets = [8, 0], sizes = [8, 96], strides = [1, 1]} : vector<64x96xf32> to vector<8x96xf32>
    %cst_14 = arith.constant dense<0.000000e+00> : vector<8x96xf32>
    %34 = tpu.matmul %31, %6, %cst_14 {dimension_numbers = #tpu.dot_dimension_numbers<[1], [0], [0], [1], [0, 0, 1, 1], [], []>} : vector<8x32xf32>, vector<32x96xf32>, vector<8x96xf32> -> vector<8x96xf32>
    %35 = vector.extract_strided_slice %33 {offsets = [0, 0], sizes = [8, 64], strides = [1, 1]} : vector<8x96xf32> to vector<8x64xf32>
    %36 = vector.extract_strided_slice %34 {offsets = [0, 0], sizes = [8, 64], strides = [1, 1]} : vector<8x96xf32> to vector<8x64xf32>
    %37 = arith.addf %35, %36 : vector<8x64xf32>
    %38 = arith.negf %37 : vector<8x64xf32>
    %39 = math.exp %38 : vector<8x64xf32>
    %cst_15 = arith.constant 1.000000e+00 : f32
    %40 = vector.broadcast %cst_15 : f32 to vector<8x64xf32>
    %41 = arith.addf %40, %39 : vector<8x64xf32>
    %42 = arith.divf %40, %41 : vector<8x64xf32>
    %43 = vector.extract_strided_slice %42 {offsets = [0, 0], sizes = [8, 32], strides = [1, 1]} : vector<8x64xf32> to vector<8x32xf32>
    %44 = vector.extract_strided_slice %42 {offsets = [0, 32], sizes = [8, 32], strides = [1, 1]} : vector<8x64xf32> to vector<8x32xf32>
    %45 = vector.extract_strided_slice %33 {offsets = [0, 64], sizes = [8, 32], strides = [1, 1]} : vector<8x96xf32> to vector<8x32xf32>
    %46 = vector.extract_strided_slice %34 {offsets = [0, 64], sizes = [8, 32], strides = [1, 1]} : vector<8x96xf32> to vector<8x32xf32>
    %47 = arith.addf %46, %9 : vector<8x32xf32>
    %48 = arith.mulf %43, %47 : vector<8x32xf32>
    %49 = arith.addf %45, %48 : vector<8x32xf32>
    %50 = math.tanh %49 : vector<8x32xf32>
    %51 = arith.subf %31, %50 : vector<8x32xf32>
    %52 = arith.mulf %44, %51 : vector<8x32xf32>
    %53 = arith.addf %50, %52 : vector<8x32xf32>
    %c8 = arith.constant 8 : index
    %c0_16 = arith.constant 0 : index
    %54 = vector.load %arg8[%c8, %c0_16] : memref<64x32xf32, #tpu.memory_space<vmem>>, vector<8x32xf32>
    tpu.vector_store %arg8[%c8, %c0_16], %53 {strides = array<i32>} : memref<64x32xf32, #tpu.memory_space<vmem>>, vector<8x32xf32>,
    %55 = vector.extract_strided_slice %5 {offsets = [16, 0], sizes = [8, 96], strides = [1, 1]} : vector<64x96xf32> to vector<8x96xf32>
    %cst_17 = arith.constant dense<0.000000e+00> : vector<8x96xf32>
    %56 = tpu.matmul %53, %6, %cst_17 {dimension_numbers = #tpu.dot_dimension_numbers<[1], [0], [0], [1], [0, 0, 1, 1], [], []>} : vector<8x32xf32>, vector<32x96xf32>, vector<8x96xf32> -> vector<8x96xf32>
    %57 = vector.extract_strided_slice %55 {offsets = [0, 0], sizes = [8, 64], strides = [1, 1]} : vector<8x96xf32> to vector<8x64xf32>
    %58 = vector.extract_strided_slice %56 {offsets = [0, 0], sizes = [8, 64], strides = [1, 1]} : vector<8x96xf32> to vector<8x64xf32>
    %59 = arith.addf %57, %58 : vector<8x64xf32>
    %60 = arith.negf %59 : vector<8x64xf32>
    %61 = math.exp %60 : vector<8x64xf32>
    %cst_18 = arith.constant 1.000000e+00 : f32
    %62 = vector.broadcast %cst_18 : f32 to vector<8x64xf32>
    %63 = arith.addf %62, %61 : vector<8x64xf32>
    %64 = arith.divf %62, %63 : vector<8x64xf32>
    %65 = vector.extract_strided_slice %64 {offsets = [0, 0], sizes = [8, 32], strides = [1, 1]} : vector<8x64xf32> to vector<8x32xf32>
    %66 = vector.extract_strided_slice %64 {offsets = [0, 32], sizes = [8, 32], strides = [1, 1]} : vector<8x64xf32> to vector<8x32xf32>
    %67 = vector.extract_strided_slice %55 {offsets = [0, 64], sizes = [8, 32], strides = [1, 1]} : vector<8x96xf32> to vector<8x32xf32>
    %68 = vector.extract_strided_slice %56 {offsets = [0, 64], sizes = [8, 32], strides = [1, 1]} : vector<8x96xf32> to vector<8x32xf32>
    %69 = arith.addf %68, %9 : vector<8x32xf32>
    %70 = arith.mulf %65, %69 : vector<8x32xf32>
    %71 = arith.addf %67, %70 : vector<8x32xf32>
    %72 = math.tanh %71 : vector<8x32xf32>
    %73 = arith.subf %53, %72 : vector<8x32xf32>
    %74 = arith.mulf %66, %73 : vector<8x32xf32>
    %75 = arith.addf %72, %74 : vector<8x32xf32>
    %c16 = arith.constant 16 : index
    %c0_19 = arith.constant 0 : index
    %76 = vector.load %arg8[%c16, %c0_19] : memref<64x32xf32, #tpu.memory_space<vmem>>, vector<8x32xf32>
    tpu.vector_store %arg8[%c16, %c0_19], %75 {strides = array<i32>} : memref<64x32xf32, #tpu.memory_space<vmem>>, vector<8x32xf32>,
    %77 = vector.extract_strided_slice %5 {offsets = [24, 0], sizes = [8, 96], strides = [1, 1]} : vector<64x96xf32> to vector<8x96xf32>
    %cst_20 = arith.constant dense<0.000000e+00> : vector<8x96xf32>
    %78 = tpu.matmul %75, %6, %cst_20 {dimension_numbers = #tpu.dot_dimension_numbers<[1], [0], [0], [1], [0, 0, 1, 1], [], []>} : vector<8x32xf32>, vector<32x96xf32>, vector<8x96xf32> -> vector<8x96xf32>
    %79 = vector.extract_strided_slice %77 {offsets = [0, 0], sizes = [8, 64], strides = [1, 1]} : vector<8x96xf32> to vector<8x64xf32>
    %80 = vector.extract_strided_slice %78 {offsets = [0, 0], sizes = [8, 64], strides = [1, 1]} : vector<8x96xf32> to vector<8x64xf32>
    %81 = arith.addf %79, %80 : vector<8x64xf32>
    %82 = arith.negf %81 : vector<8x64xf32>
    %83 = math.exp %82 : vector<8x64xf32>
    %cst_21 = arith.constant 1.000000e+00 : f32
    %84 = vector.broadcast %cst_21 : f32 to vector<8x64xf32>
    %85 = arith.addf %84, %83 : vector<8x64xf32>
    %86 = arith.divf %84, %85 : vector<8x64xf32>
    %87 = vector.extract_strided_slice %86 {offsets = [0, 0], sizes = [8, 32], strides = [1, 1]} : vector<8x64xf32> to vector<8x32xf32>
    %88 = vector.extract_strided_slice %86 {offsets = [0, 32], sizes = [8, 32], strides = [1, 1]} : vector<8x64xf32> to vector<8x32xf32>
    %89 = vector.extract_strided_slice %77 {offsets = [0, 64], sizes = [8, 32], strides = [1, 1]} : vector<8x96xf32> to vector<8x32xf32>
    %90 = vector.extract_strided_slice %78 {offsets = [0, 64], sizes = [8, 32], strides = [1, 1]} : vector<8x96xf32> to vector<8x32xf32>
    %91 = arith.addf %90, %9 : vector<8x32xf32>
    %92 = arith.mulf %87, %91 : vector<8x32xf32>
    %93 = arith.addf %89, %92 : vector<8x32xf32>
    %94 = math.tanh %93 : vector<8x32xf32>
    %95 = arith.subf %75, %94 : vector<8x32xf32>
    %96 = arith.mulf %88, %95 : vector<8x32xf32>
    %97 = arith.addf %94, %96 : vector<8x32xf32>
    %c24 = arith.constant 24 : index
    %c0_22 = arith.constant 0 : index
    %98 = vector.load %arg8[%c24, %c0_22] : memref<64x32xf32, #tpu.memory_space<vmem>>, vector<8x32xf32>
    tpu.vector_store %arg8[%c24, %c0_22], %97 {strides = array<i32>} : memref<64x32xf32, #tpu.memory_space<vmem>>, vector<8x32xf32>,
    %99 = vector.extract_strided_slice %5 {offsets = [32, 0], sizes = [8, 96], strides = [1, 1]} : vector<64x96xf32> to vector<8x96xf32>
    %cst_23 = arith.constant dense<0.000000e+00> : vector<8x96xf32>
    %100 = tpu.matmul %97, %6, %cst_23 {dimension_numbers = #tpu.dot_dimension_numbers<[1], [0], [0], [1], [0, 0, 1, 1], [], []>} : vector<8x32xf32>, vector<32x96xf32>, vector<8x96xf32> -> vector<8x96xf32>
    %101 = vector.extract_strided_slice %99 {offsets = [0, 0], sizes = [8, 64], strides = [1, 1]} : vector<8x96xf32> to vector<8x64xf32>
    %102 = vector.extract_strided_slice %100 {offsets = [0, 0], sizes = [8, 64], strides = [1, 1]} : vector<8x96xf32> to vector<8x64xf32>
    %103 = arith.addf %101, %102 : vector<8x64xf32>
    %104 = arith.negf %103 : vector<8x64xf32>
    %105 = math.exp %104 : vector<8x64xf32>
    %cst_24 = arith.constant 1.000000e+00 : f32
    %106 = vector.broadcast %cst_24 : f32 to vector<8x64xf32>
    %107 = arith.addf %106, %105 : vector<8x64xf32>
    %108 = arith.divf %106, %107 : vector<8x64xf32>
    %109 = vector.extract_strided_slice %108 {offsets = [0, 0], sizes = [8, 32], strides = [1, 1]} : vector<8x64xf32> to vector<8x32xf32>
    %110 = vector.extract_strided_slice %108 {offsets = [0, 32], sizes = [8, 32], strides = [1, 1]} : vector<8x64xf32> to vector<8x32xf32>
    %111 = vector.extract_strided_slice %99 {offsets = [0, 64], sizes = [8, 32], strides = [1, 1]} : vector<8x96xf32> to vector<8x32xf32>
    %112 = vector.extract_strided_slice %100 {offsets = [0, 64], sizes = [8, 32], strides = [1, 1]} : vector<8x96xf32> to vector<8x32xf32>
    %113 = arith.addf %112, %9 : vector<8x32xf32>
    %114 = arith.mulf %109, %113 : vector<8x32xf32>
    %115 = arith.addf %111, %114 : vector<8x32xf32>
    %116 = math.tanh %115 : vector<8x32xf32>
    %117 = arith.subf %97, %116 : vector<8x32xf32>
    %118 = arith.mulf %110, %117 : vector<8x32xf32>
    %119 = arith.addf %116, %118 : vector<8x32xf32>
    %c32 = arith.constant 32 : index
    %c0_25 = arith.constant 0 : index
    %120 = vector.load %arg8[%c32, %c0_25] : memref<64x32xf32, #tpu.memory_space<vmem>>, vector<8x32xf32>
    tpu.vector_store %arg8[%c32, %c0_25], %119 {strides = array<i32>} : memref<64x32xf32, #tpu.memory_space<vmem>>, vector<8x32xf32>,
    %121 = vector.extract_strided_slice %5 {offsets = [40, 0], sizes = [8, 96], strides = [1, 1]} : vector<64x96xf32> to vector<8x96xf32>
    %cst_26 = arith.constant dense<0.000000e+00> : vector<8x96xf32>
    %122 = tpu.matmul %119, %6, %cst_26 {dimension_numbers = #tpu.dot_dimension_numbers<[1], [0], [0], [1], [0, 0, 1, 1], [], []>} : vector<8x32xf32>, vector<32x96xf32>, vector<8x96xf32> -> vector<8x96xf32>
    %123 = vector.extract_strided_slice %121 {offsets = [0, 0], sizes = [8, 64], strides = [1, 1]} : vector<8x96xf32> to vector<8x64xf32>
    %124 = vector.extract_strided_slice %122 {offsets = [0, 0], sizes = [8, 64], strides = [1, 1]} : vector<8x96xf32> to vector<8x64xf32>
    %125 = arith.addf %123, %124 : vector<8x64xf32>
    %126 = arith.negf %125 : vector<8x64xf32>
    %127 = math.exp %126 : vector<8x64xf32>
    %cst_27 = arith.constant 1.000000e+00 : f32
    %128 = vector.broadcast %cst_27 : f32 to vector<8x64xf32>
    %129 = arith.addf %128, %127 : vector<8x64xf32>
    %130 = arith.divf %128, %129 : vector<8x64xf32>
    %131 = vector.extract_strided_slice %130 {offsets = [0, 0], sizes = [8, 32], strides = [1, 1]} : vector<8x64xf32> to vector<8x32xf32>
    %132 = vector.extract_strided_slice %130 {offsets = [0, 32], sizes = [8, 32], strides = [1, 1]} : vector<8x64xf32> to vector<8x32xf32>
    %133 = vector.extract_strided_slice %121 {offsets = [0, 64], sizes = [8, 32], strides = [1, 1]} : vector<8x96xf32> to vector<8x32xf32>
    %134 = vector.extract_strided_slice %122 {offsets = [0, 64], sizes = [8, 32], strides = [1, 1]} : vector<8x96xf32> to vector<8x32xf32>
    %135 = arith.addf %134, %9 : vector<8x32xf32>
    %136 = arith.mulf %131, %135 : vector<8x32xf32>
    %137 = arith.addf %133, %136 : vector<8x32xf32>
    %138 = math.tanh %137 : vector<8x32xf32>
    %139 = arith.subf %119, %138 : vector<8x32xf32>
    %140 = arith.mulf %132, %139 : vector<8x32xf32>
    %141 = arith.addf %138, %140 : vector<8x32xf32>
    %c40 = arith.constant 40 : index
    %c0_28 = arith.constant 0 : index
    %142 = vector.load %arg8[%c40, %c0_28] : memref<64x32xf32, #tpu.memory_space<vmem>>, vector<8x32xf32>
    tpu.vector_store %arg8[%c40, %c0_28], %141 {strides = array<i32>} : memref<64x32xf32, #tpu.memory_space<vmem>>, vector<8x32xf32>,
    %143 = vector.extract_strided_slice %5 {offsets = [48, 0], sizes = [8, 96], strides = [1, 1]} : vector<64x96xf32> to vector<8x96xf32>
    %cst_29 = arith.constant dense<0.000000e+00> : vector<8x96xf32>
    %144 = tpu.matmul %141, %6, %cst_29 {dimension_numbers = #tpu.dot_dimension_numbers<[1], [0], [0], [1], [0, 0, 1, 1], [], []>} : vector<8x32xf32>, vector<32x96xf32>, vector<8x96xf32> -> vector<8x96xf32>
    %145 = vector.extract_strided_slice %143 {offsets = [0, 0], sizes = [8, 64], strides = [1, 1]} : vector<8x96xf32> to vector<8x64xf32>
    %146 = vector.extract_strided_slice %144 {offsets = [0, 0], sizes = [8, 64], strides = [1, 1]} : vector<8x96xf32> to vector<8x64xf32>
    %147 = arith.addf %145, %146 : vector<8x64xf32>
    %148 = arith.negf %147 : vector<8x64xf32>
    %149 = math.exp %148 : vector<8x64xf32>
    %cst_30 = arith.constant 1.000000e+00 : f32
    %150 = vector.broadcast %cst_30 : f32 to vector<8x64xf32>
    %151 = arith.addf %150, %149 : vector<8x64xf32>
    %152 = arith.divf %150, %151 : vector<8x64xf32>
    %153 = vector.extract_strided_slice %152 {offsets = [0, 0], sizes = [8, 32], strides = [1, 1]} : vector<8x64xf32> to vector<8x32xf32>
    %154 = vector.extract_strided_slice %152 {offsets = [0, 32], sizes = [8, 32], strides = [1, 1]} : vector<8x64xf32> to vector<8x32xf32>
    %155 = vector.extract_strided_slice %143 {offsets = [0, 64], sizes = [8, 32], strides = [1, 1]} : vector<8x96xf32> to vector<8x32xf32>
    %156 = vector.extract_strided_slice %144 {offsets = [0, 64], sizes = [8, 32], strides = [1, 1]} : vector<8x96xf32> to vector<8x32xf32>
    %157 = arith.addf %156, %9 : vector<8x32xf32>
    %158 = arith.mulf %153, %157 : vector<8x32xf32>
    %159 = arith.addf %155, %158 : vector<8x32xf32>
    %160 = math.tanh %159 : vector<8x32xf32>
    %161 = arith.subf %141, %160 : vector<8x32xf32>
    %162 = arith.mulf %154, %161 : vector<8x32xf32>
    %163 = arith.addf %160, %162 : vector<8x32xf32>
    %c48 = arith.constant 48 : index
    %c0_31 = arith.constant 0 : index
    %164 = vector.load %arg8[%c48, %c0_31] : memref<64x32xf32, #tpu.memory_space<vmem>>, vector<8x32xf32>
    tpu.vector_store %arg8[%c48, %c0_31], %163 {strides = array<i32>} : memref<64x32xf32, #tpu.memory_space<vmem>>, vector<8x32xf32>,
    %165 = vector.extract_strided_slice %5 {offsets = [56, 0], sizes = [8, 96], strides = [1, 1]} : vector<64x96xf32> to vector<8x96xf32>
    %cst_32 = arith.constant dense<0.000000e+00> : vector<8x96xf32>
    %166 = tpu.matmul %163, %6, %cst_32 {dimension_numbers = #tpu.dot_dimension_numbers<[1], [0], [0], [1], [0, 0, 1, 1], [], []>} : vector<8x32xf32>, vector<32x96xf32>, vector<8x96xf32> -> vector<8x96xf32>
    %167 = vector.extract_strided_slice %165 {offsets = [0, 0], sizes = [8, 64], strides = [1, 1]} : vector<8x96xf32> to vector<8x64xf32>
    %168 = vector.extract_strided_slice %166 {offsets = [0, 0], sizes = [8, 64], strides = [1, 1]} : vector<8x96xf32> to vector<8x64xf32>
    %169 = arith.addf %167, %168 : vector<8x64xf32>
    %170 = arith.negf %169 : vector<8x64xf32>
    %171 = math.exp %170 : vector<8x64xf32>
    %cst_33 = arith.constant 1.000000e+00 : f32
    %172 = vector.broadcast %cst_33 : f32 to vector<8x64xf32>
    %173 = arith.addf %172, %171 : vector<8x64xf32>
    %174 = arith.divf %172, %173 : vector<8x64xf32>
    %175 = vector.extract_strided_slice %174 {offsets = [0, 0], sizes = [8, 32], strides = [1, 1]} : vector<8x64xf32> to vector<8x32xf32>
    %176 = vector.extract_strided_slice %174 {offsets = [0, 32], sizes = [8, 32], strides = [1, 1]} : vector<8x64xf32> to vector<8x32xf32>
    %177 = vector.extract_strided_slice %165 {offsets = [0, 64], sizes = [8, 32], strides = [1, 1]} : vector<8x96xf32> to vector<8x32xf32>
    %178 = vector.extract_strided_slice %166 {offsets = [0, 64], sizes = [8, 32], strides = [1, 1]} : vector<8x96xf32> to vector<8x32xf32>
    %179 = arith.addf %178, %9 : vector<8x32xf32>
    %180 = arith.mulf %175, %179 : vector<8x32xf32>
    %181 = arith.addf %177, %180 : vector<8x32xf32>
    %182 = math.tanh %181 : vector<8x32xf32>
    %183 = arith.subf %163, %182 : vector<8x32xf32>
    %184 = arith.mulf %176, %183 : vector<8x32xf32>
    %185 = arith.addf %182, %184 : vector<8x32xf32>
    %c56 = arith.constant 56 : index
    %c0_34 = arith.constant 0 : index
    %186 = vector.load %arg8[%c56, %c0_34] : memref<64x32xf32, #tpu.memory_space<vmem>>, vector<8x32xf32>
    tpu.vector_store %arg8[%c56, %c0_34], %185 {strides = array<i32>} : memref<64x32xf32, #tpu.memory_space<vmem>>, vector<8x32xf32>,
    %c0_35 = arith.constant 0 : index
    %c0_36 = arith.constant 0 : index
    %187 = vector.load %arg8[%c0_35, %c0_36] : memref<64x32xf32, #tpu.memory_space<vmem>>, vector<64x32xf32>
    %c0_37 = arith.constant 0 : index
    %c0_38 = arith.constant 0 : index
    %188 = vector.load %arg5[%c0_37, %c0_38] : memref<32x128xf32, #tpu.memory_space<vmem>>, vector<32x128xf32>
    %cst_39 = arith.constant dense<0.000000e+00> : vector<64x128xf32>
    %189 = tpu.matmul %187, %188, %cst_39 {dimension_numbers = #tpu.dot_dimension_numbers<[1], [0], [0], [1], [0, 0, 1, 1], [], []>} : vector<64x32xf32>, vector<32x128xf32>, vector<64x128xf32> -> vector<64x128xf32>
    %c0_40 = arith.constant 0 : index
    %c0_41 = arith.constant 0 : index
    %190 = vector.load %arg6[%c0_40, %c0_41] : memref<1x128xf32, #tpu.memory_space<vmem>>, vector<1x128xf32>
    %191 = vector.broadcast %190 : vector<1x128xf32> to vector<64x128xf32>
    %192 = arith.addf %189, %191 : vector<64x128xf32>
    %cst_42 = arith.constant 1.000000e+01 : f32
    %193 = vector.broadcast %cst_42 : f32 to vector<64x128xf32>
    %194 = arith.mulf %193, %192 : vector<64x128xf32>
    %cst_43 = arith.constant 2.000000e+01 : f32
    %195 = vector.broadcast %cst_43 : f32 to vector<64x128xf32>
    %196 = arith.cmpf ogt, %194, %195 : vector<64x128xf32>
    %cst_44 = arith.constant 2.000000e+01 : f32
    %197 = vector.broadcast %cst_44 : f32 to vector<64x128xf32>
    %198 = arith.minimumf %194, %197 : vector<64x128xf32>
    %199 = math.exp %198 : vector<64x128xf32>
    %200 = math.log1p %199 : vector<64x128xf32>
    %cst_45 = arith.constant 1.000000e+01 : f32
    %201 = vector.broadcast %cst_45 : f32 to vector<64x128xf32>
    %202 = arith.divf %200, %201 : vector<64x128xf32>
    %203 = arith.select %196, %192, %202 : vector<64x128xi1>, vector<64x128xf32>
    %c0_46 = arith.constant 0 : index
    %c0_47 = arith.constant 0 : index
    %204 = vector.load %arg7[%c0_46, %c0_47] : memref<64x128xf32, #tpu.memory_space<vmem>>, vector<64x128xf32>
    tpu.vector_store %arg7[%c0_46, %c0_47], %203 {strides = array<i32>} : memref<64x128xf32, #tpu.memory_space<vmem>>, vector<64x128xf32>,
    return
  }
}

</mosaic_0001>

<llo_original>
// kernel: forward.1
$region0: #{forward.1}
  #allocation0 [shape = 'u32[]', space=smem, size = 0x4, offset = 0x4, fixed_abs, tag = 'smem constant byte address 0x4 - core index']
  #allocation1 [shape = 'u32[72,128]{1,0:T(1,128)}', space=vmem, size = 0x9000, scoped, tag = 'internal scratch']
  %s0 = inlined_call_operand.hbm [shape: f32[64,16], index: 0, kind: input, shape index: {}]
  %s1 = inlined_call_operand.hbm [shape: f32[16,96], index: 1, kind: input, shape index: {}]
  %s2 = inlined_call_operand.hbm [shape: f32[1,96], index: 2, kind: input, shape index: {}]
  %s3 = inlined_call_operand.hbm [shape: f32[32,96], index: 3, kind: input, shape index: {}]
  %s4 = inlined_call_operand.vmem [shape: f32[1,32], index: 4, kind: input, shape index: {}]
  %s5 = inlined_call_operand.hbm [shape: f32[32,128], index: 5, kind: input, shape index: {}]
  %s6 = inlined_call_operand.vmem [shape: f32[1,128], index: 6, kind: input, shape index: {}]
  %s7 = inlined_call_operand.vmem [shape: f32[64,128], index: 7, kind: output, shape index: {0}]
  %s8 = inlined_call_operand.hbm [shape: f32[64,32], index: 8, kind: output, shape index: {1}]
  %9 = xla_tuple %s7, %s8
  %s10 = sld [smem:[#allocation0]]
  $region66: #{forward.1} parent=0
    _
  %s12 = ssub.s32 1, %s10
  %s13 = scalar_select 0, %s12, %s10
  $region1: #{forward.1} parent=0
    #allocation2 [shape = 'u8[32768]{0}', space=vmem, size = 0x8000, scoped, tag = 'input window, operand 0, single buffered']
    #allocation3 [shape = 's32[1]{0}', space=sflag, size = 0x4, scoped, tag = 'scoped memory for forward.1']
    #allocation4 [shape = 's32[1]{0}', space=sflag, size = 0x4, scoped, tag = 'scoped memory for forward.1']
    #allocation5 [shape = 'u8[8192]{0}', space=vmem, size = 0x2000, scoped, tag = 'input window, operand 1, single buffered']
    #allocation6 [shape = 's32[1]{0}', space=sflag, size = 0x4, scoped, tag = 'scoped memory for forward.1']
    #allocation7 [shape = 'u8[512]{0}', space=vmem, size = 0x400, scoped, tag = 'input window, operand 2, single buffered']
    #allocation8 [shape = 'u8[16384]{0}', space=vmem, size = 0x4000, scoped, tag = 'input window, operand 3, single buffered']
    #allocation9 [shape = 's32[1]{0}', space=sflag, size = 0x4, scoped, tag = 'scoped memory for forward.1']
    #allocation10 [shape = 'u8[16384]{0}', space=vmem, size = 0x4000, scoped, tag = 'input window, operand 5, single buffered']
    #allocation11 [shape = 'u8[32768]{0}', space=vmem, size = 0x8000, scoped, tag = 'output window, operand 1, single buffered']
    %14 = vsyncpa [#allocation3], 0
    %15 = vsyncpa [#allocation6], 0
    %16 = vsyncpa [#allocation9], 0
    %17 = vsyncpa [#allocation4], 0
    // Predicated region
    $region2: #{forward.1} parent=1 // pred_check
      _
    $region3: #{forward.1} parent=1 // pred_check_branch
      %19 = sbr.rel (0) target = $region5
    $region4: #{forward.1} parent=1 // pred_region
      %21 = vsyncadd [#allocation3], 0
      %s22 = sshll.u32 %s0, 4
      %s23 = int_to_ptr.hbm [resolvable:$true] %s22
      %s24 = sshll.u32 [#allocation2], 4
      %s25 = int_to_ptr.vmem [resolvable:$true] %s24
      %30 = dma.hbm_to_vmem [thread:$0]  %s23, 1024, %s25, [#allocation3], 128, 128, 8
    $region5: #{forward.1} parent=1 // pred_fallthru
      _
    // Predicated region
    $region6: #{forward.1} parent=1 // pred_check
      _
    $region7: #{forward.1} parent=1 // pred_check_branch
      %32 = sbr.rel (0) target = $region9
    $region8: #{forward.1} parent=1 // pred_region
      %34 = vsyncadd [#allocation6], 0
      %s35 = sshll.u32 %s1, 4
      %s36 = int_to_ptr.hbm [resolvable:$true] %s35
      %s37 = sshll.u32 [#allocation5], 4
      %s38 = int_to_ptr.vmem [resolvable:$true] %s37
      %43 = dma.hbm_to_vmem [thread:$0]  %s36, 256, %s38, [#allocation6], 128, 128, 8
    $region9: #{forward.1} parent=1 // pred_fallthru
      _
    // Predicated region
    $region10: #{forward.1} parent=1 // pred_check
      _
    $region11: #{forward.1} parent=1 // pred_check_branch
      %45 = sbr.rel (0) target = $region13
    $region12: #{forward.1} parent=1 // pred_region
      %47 = vsyncadd [#allocation6], 0
      %s49 = sshll.u32 %s2, 4
      %s50 = int_to_ptr.hbm [resolvable:$true] %s49
      %s51 = sshll.u32 [#allocation7], 4
      %s52 = int_to_ptr.vmem [resolvable:$true] %s51
      %54 = dma.hbm_to_vmem [thread:$0]  %s50, 16, %s52, [#allocation6]
    $region13: #{forward.1} parent=1 // pred_fallthru
      _
    // Predicated region
    $region14: #{forward.1} parent=1 // pred_check
      _
    $region15: #{forward.1} parent=1 // pred_check_branch
      %56 = sbr.rel (0) target = $region17
    $region16: #{forward.1} parent=1 // pred_region
      %58 = vsyncadd [#allocation9], 0
      %s59 = sshll.u32 %s3, 4
      %s60 = int_to_ptr.hbm [resolvable:$true] %s59
      %s61 = sshll.u32 [#allocation8], 4
      %s62 = int_to_ptr.vmem [resolvable:$true] %s61
      %67 = dma.hbm_to_vmem [thread:$0]  %s60, 512, %s62, [#allocation9], 128, 128, 8
    $region17: #{forward.1} parent=1 // pred_fallthru
      _
    // Predicated region
    $region18: #{forward.1} parent=1 // pred_check
      _
    $region19: #{forward.1} parent=1 // pred_check_branch
      %69 = sbr.rel (0) target = $region21
    $region20: #{forward.1} parent=1 // pred_region
      _
    $region21: #{forward.1} parent=1 // pred_fallthru
      _
    // Predicated region
    $region22: #{forward.1} parent=1 // pred_check
      _
    $region23: #{forward.1} parent=1 // pred_check_branch
      %71 = sbr.rel (0) target = $region25
    $region24: #{forward.1} parent=1 // pred_region
      %73 = vsyncadd [#allocation9], 0
      %s74 = sshll.u32 %s5, 4
      %s75 = int_to_ptr.hbm [resolvable:$true] %s74
      %s76 = sshll.u32 [#allocation10], 4
      %s77 = int_to_ptr.vmem [resolvable:$true] %s76
      %82 = dma.hbm_to_vmem [thread:$0]  %s75, 512, %s77, [#allocation9], 128, 128, 8
    $region25: #{forward.1} parent=1 // pred_fallthru
      _
    // Predicated region
    $region26: #{forward.1} parent=1 // pred_check
      _
    $region27: #{forward.1} parent=1 // pred_check_branch
      %84 = sbr.rel (0) target = $region29
    $region28: #{forward.1} parent=1 // pred_region
      _
    $region29: #{forward.1} parent=1 // pred_fallthru
      _
    // Predicated region
    $region30: #{forward.1} parent=1 // pred_check
      _
    $region31: #{forward.1} parent=1 // pred_check_branch
      %86 = sbr.rel (0) target = $region33
    $region32: #{forward.1} parent=1 // pred_region
      %88 = dma.done [#allocation3], 1024
    $region33: #{forward.1} parent=1 // pred_fallthru
      _
    // Predicated region
    $region34: #{forward.1} parent=1 // pred_check
      _
    $region35: #{forward.1} parent=1 // pred_check_branch
      %90 = sbr.rel (0) target = $region37
    $region36: #{forward.1} parent=1 // pred_region
      %92 = dma.done [#allocation6], 256
    $region37: #{forward.1} parent=1 // pred_fallthru
      _
    // Predicated region
    $region38: #{forward.1} parent=1 // pred_check
      _
    $region39: #{forward.1} parent=1 // pred_check_branch
      %94 = sbr.rel (0) target = $region41
    $region40: #{forward.1} parent=1 // pred_region
      %96 = dma.done [#allocation6], 16
    $region41: #{forward.1} parent=1 // pred_fallthru
      _
    // Predicated region
    $region42: #{forward.1} parent=1 // pred_check
      _
    $region43: #{forward.1} parent=1 // pred_check_branch
      %98 = sbr.rel (0) target = $region45
    $region44: #{forward.1} parent=1 // pred_region
      %100 = dma.done [#allocation9], 512
    $region45: #{forward.1} parent=1 // pred_fallthru
      _
    // Predicated region
    $region46: #{forward.1} parent=1 // pred_check
      _
    $region47: #{forward.1} parent=1 // pred_check_branch
      %102 = sbr.rel (0) target = $region49
    $region48: #{forward.1} parent=1 // pred_region
      %104 = dma.done [#allocation9], 512
    $region49: #{forward.1} parent=1 // pred_fallthru
      _
    %v105 = vld [vmem:[#allocation2] sm:$0xff]
    %v106 = vld [vmem:[#allocation2 + $0x8] sm:$0xff]
    %v107 = vld [vmem:[#allocation2 + $0x10] sm:$0xff]
    %v108 = vld [vmem:[#allocation2 + $0x18] sm:$0xff]
    %v109 = vld [vmem:[#allocation2 + $0x20] sm:$0xff]
    %v110 = vld [vmem:[#allocation2 + $0x28] sm:$0xff]
    %v111 = vld [vmem:[#allocation2 + $0x30] sm:$0xff]
    %v112 = vld [vmem:[#allocation2 + $0x38] sm:$0xff]
    %v113 = vld [vmem:[#allocation5] sm:$0xff]
    %v114 = vld [vmem:[#allocation5 + $0x8] sm:$0xff]
    %v115 = vld [vmem:[#allocation7] sm:$0x1]
    %v117 = vperm.slane %v115, 0
    %vm119 = vcmask 130048
    %v121 = vsel %vm119, %v105, 0
    %v124 = vsel %vm119, %v106, 0
    %v127 = vsel %vm119, %v107, 0
    %v130 = vsel %vm119, %v108, 0
    %v133 = vsel %vm119, %v109, 0
    %v136 = vsel %vm119, %v110, 0
    %v139 = vsel %vm119, %v111, 0
    %v142 = vsel %vm119, %v112, 0
    %144 = vmatpush.msra.mxu0 0.0
    %145 = vmatpush.msra.mxu0 0.0
    %146 = vmatpush.msra.mxu0 0.0
    %147 = vmatpush.msra.mxu0 0.0
    %148 = vmatpush.msra.mxu0 0.0
    %149 = vmatpush.msra.mxu0 0.0
    %150 = vmatpush.msra.mxu0 0.0
    %151 = vmatpush.msra.mxu0 0.0
    %152 = vmatpush.msra.mxu0 0.0
    %153 = vmatpush.msra.mxu0 0.0
    %154 = vmatpush.msra.mxu0 0.0
    %155 = vmatpush.msra.mxu0 0.0
    %156 = vmatpush.msra.mxu0 0.0
    %157 = vmatpush.msra.mxu0 0.0
    %158 = vmatpush.msra.mxu0 %v114
    %159 = vmatpush.msra.mxu0 %v113
    %160 = vmatmul.f32.gmra.mxu0 %v121
    %v161 = vpop.f32.mrf.mxu0
    %v162 = vadd.f32 %v117, %v161
    %163 = vmatmul.f32.gmra.mxu0 %v124
    %v164 = vpop.f32.mrf.mxu0
    %v165 = vadd.f32 %v117, %v164
    %166 = vmatmul.f32.gmra.mxu0 %v127
    %v167 = vpop.f32.mrf.mxu0
    %v168 = vadd.f32 %v117, %v167
    %169 = vmatmul.f32.gmra.mxu0 %v130
    %v170 = vpop.f32.mrf.mxu0
    %v171 = vadd.f32 %v117, %v170
    %172 = vmatmul.f32.gmra.mxu0 %v133
    %v173 = vpop.f32.mrf.mxu0
    %v174 = vadd.f32 %v117, %v173
    %175 = vmatmul.f32.gmra.mxu0 %v136
    %v176 = vpop.f32.mrf.mxu0
    %v177 = vadd.f32 %v117, %v176
    %178 = vmatmul.f32.gmra.mxu0 %v139
    %v179 = vpop.f32.mrf.mxu0
    %v180 = vadd.f32 %v117, %v179
    %181 = vmatmul.f32.gmra.mxu0 %v142
    %v182 = vpop.f32.mrf.mxu0
    %v183 = vadd.f32 %v117, %v182
    %184 = vdwg.mxu0
    %v185 = vld [vmem:[#allocation8] sm:$0xff]
    %v186 = vld [vmem:[#allocation8 + $0x8] sm:$0xff]
    %v187 = vld [vmem:[#allocation8 + $0x10] sm:$0xff]
    %v188 = vld [vmem:[#allocation8 + $0x18] sm:$0xff]
    %v189 = vld [vmem:[%s4] sm:$0x1]
    %v191 = vperm.slane %v189, 0
    %vm192 = vcmask 261120
    %v194 = vsel %vm192, 0.0, 0
    %196 = vmatpush.msra.mxu0 0.0
    %197 = vmatpush.msra.mxu0 0.0
    %198 = vmatpush.msra.mxu0 0.0
    %199 = vmatpush.msra.mxu0 0.0
    %200 = vmatpush.msra.mxu0 0.0
    %201 = vmatpush.msra.mxu0 0.0
    %202 = vmatpush.msra.mxu0 0.0
    %203 = vmatpush.msra.mxu0 0.0
    %204 = vmatpush.msra.mxu0 0.0
    %205 = vmatpush.msra.mxu0 0.0
    %206 = vmatpush.msra.mxu0 0.0
    %207 = vmatpush.msra.mxu0 0.0
    %208 = vmatpush.msra.mxu0 %v188
    %209 = vmatpush.msra.mxu0 %v187
    %210 = vmatpush.msra.mxu0 %v186
    %211 = vmatpush.msra.mxu0 %v185
    %212 = vmatmul.f32.gmra.mxu0 %v194
    %v213 = vpop.f32.mrf.mxu0
    %v214 = vadd.f32 0.0, %v213
    %215 = vdwg.mxu0
    %v216 = vadd.f32 %v162, %v214
    %v217 = vxor.u32 %v216, 2147483648
    %v218 = vmul.f32 %v217, 1.442695
    %v219 = vpow.pop %v218
    %v220 = vadd.f32 %v219, 1.0
    %v221 = vrcp.pop %v220
    %v222 = vmul.f32 %v220, %v221
    %v223 = vsub.f32 1.0, %v222
    %v224 = vmul.f32 %v221, %v223
    %v225 = vadd.f32 %v221, %v224
    %vm226 = vweird.f32 %v220
    %vm227 = vweird.f32 %v221
    %vm228 = vmor %vm226, %vm227
    %v229 = vsel %vm228, %v221, %v225
    %v230 = vand.u32 2147483647, %v220
    %vm231 = vcmp.eq.f32.partialorder %v230, 8.507059e+37
    %v232 = vand.u32 %v220, 2147483648
    %v233 = vor.u32 1.1754944e-38, %v232
    %v234 = vsel %vm231, %v233, %v229
    %v235 = vmul.f32 1.0, %v234
    %236 = vrot.lane.b32.xlu0 %v191, 64
    %v237 = vpop.permute.xlu0 %236
    %v239 = vadd.f32 %v214, %v237
    %241 = vrot.lane.b32.xlu0 %v239, 64
    %v242 = vpop.permute.xlu0 %241
    %v244 = vmul.f32 %v235, %v242
    %246 = vrot.lane.b32.xlu0 %v244, 64
    %v247 = vpop.permute.xlu0 %246
    %v249 = vadd.f32 %v162, %v247
    %v250 = vtanh.pop %v249
    %v251 = vsub.f32 0.0, %v250
    %253 = vrot.lane.b32.xlu0 %v251, 96
    %v254 = vpop.permute.xlu0 %253
    %v256 = vmul.f32 %v235, %v254
    %258 = vrot.lane.b32.xlu0 %v256, 32
    %v259 = vpop.permute.xlu0 %258
    %v261 = vadd.f32 %v250, %v259
    %263 = vrot.lane.b32.xlu0 %v261, 64
    %v264 = vpop.permute.xlu0 %263
    %266 = vst.msk [vmem:[#allocation11] sm:$0xff] %vm192, %v264
    %v267 = vsel %vm192, %v264, 0
    %269 = vmatpush.msra.mxu0 0.0
    %270 = vmatpush.msra.mxu0 0.0
    %271 = vmatpush.msra.mxu0 0.0
    %272 = vmatpush.msra.mxu0 0.0
    %273 = vmatpush.msra.mxu0 0.0
    %274 = vmatpush.msra.mxu0 0.0
    %275 = vmatpush.msra.mxu0 0.0
    %276 = vmatpush.msra.mxu0 0.0
    %277 = vmatpush.msra.mxu0 0.0
    %278 = vmatpush.msra.mxu0 0.0
    %279 = vmatpush.msra.mxu0 0.0
    %280 = vmatpush.msra.mxu0 0.0
    %281 = vmatpush.msra.mxu0 %v188
    %282 = vmatpush.msra.mxu0 %v187
    %283 = vmatpush.msra.mxu0 %v186
    %284 = vmatpush.msra.mxu0 %v185
    %285 = vmatmul.f32.gmra.mxu0 %v267
    %v286 = vpop.f32.mrf.mxu0
    %v287 = vadd.f32 0.0, %v286
    %288 = vdwg.mxu0
    %v289 = vadd.f32 %v165, %v287
    %v290 = vxor.u32 %v289, 2147483648
    %v291 = vmul.f32 %v290, 1.442695
    %v292 = vpow.pop %v291
    %v293 = vadd.f32 %v292, 1.0
    %v294 = vrcp.pop %v293
    %v295 = vmul.f32 %v293, %v294
    %v296 = vsub.f32 1.0, %v295
    %v297 = vmul.f32 %v294, %v296
    %v298 = vadd.f32 %v294, %v297
    %vm299 = vweird.f32 %v293
    %vm300 = vweird.f32 %v294
    %vm301 = vmor %vm299, %vm300
    %v302 = vsel %vm301, %v294, %v298
    %v303 = vand.u32 2147483647, %v293
    %vm304 = vcmp.eq.f32.partialorder %v303, 8.507059e+37
    %v305 = vand.u32 %v293, 2147483648
    %v306 = vor.u32 1.1754944e-38, %v305
    %v307 = vsel %vm304, %v306, %v302
    %v308 = vmul.f32 1.0, %v307
    %v309 = vadd.f32 %v287, %v237
    %311 = vrot.lane.b32.xlu0 %v309, 64
    %v312 = vpop.permute.xlu0 %311
    %v314 = vmul.f32 %v308, %v312
    %316 = vrot.lane.b32.xlu0 %v314, 64
    %v317 = vpop.permute.xlu0 %316
    %v319 = vadd.f32 %v165, %v317
    %v320 = vtanh.pop %v319
    %v321 = vsub.f32 %v261, %v320
    %323 = vrot.lane.b32.xlu0 %v321, 96
    %v324 = vpop.permute.xlu0 %323
    %v326 = vmul.f32 %v308, %v324
    %328 = vrot.lane.b32.xlu0 %v326, 32
    %v329 = vpop.permute.xlu0 %328
    %v331 = vadd.f32 %v320, %v329
    %333 = vrot.lane.b32.xlu0 %v331, 64
    %v334 = vpop.permute.xlu0 %333
    %336 = vst.msk [vmem:[#allocation11 + $0x8] sm:$0xff] %vm192, %v334
    %v337 = vsel %vm192, %v334, 0
    %339 = vmatpush.msra.mxu0 0.0
    %340 = vmatpush.msra.mxu0 0.0
    %341 = vmatpush.msra.mxu0 0.0
    %342 = vmatpush.msra.mxu0 0.0
    %343 = vmatpush.msra.mxu0 0.0
    %344 = vmatpush.msra.mxu0 0.0
    %345 = vmatpush.msra.mxu0 0.0
    %346 = vmatpush.msra.mxu0 0.0
    %347 = vmatpush.msra.mxu0 0.0
    %348 = vmatpush.msra.mxu0 0.0
    %349 = vmatpush.msra.mxu0 0.0
    %350 = vmatpush.msra.mxu0 0.0
    %351 = vmatpush.msra.mxu0 %v188
    %352 = vmatpush.msra.mxu0 %v187
    %353 = vmatpush.msra.mxu0 %v186
    %354 = vmatpush.msra.mxu0 %v185
    %355 = vmatmul.f32.gmra.mxu0 %v337
    %v356 = vpop.f32.mrf.mxu0
    %v357 = vadd.f32 0.0, %v356
    %358 = vdwg.mxu0
    %v359 = vadd.f32 %v168, %v357
    %v360 = vxor.u32 %v359, 2147483648
    %v361 = vmul.f32 %v360, 1.442695
    %v362 = vpow.pop %v361
    %v363 = vadd.f32 %v362, 1.0
    %v364 = vrcp.pop %v363
    %v365 = vmul.f32 %v363, %v364
    %v366 = vsub.f32 1.0, %v365
    %v367 = vmul.f32 %v364, %v366
    %v368 = vadd.f32 %v364, %v367
    %vm369 = vweird.f32 %v363
    %vm370 = vweird.f32 %v364
    %vm371 = vmor %vm369, %vm370
    %v372 = vsel %vm371, %v364, %v368
    %v373 = vand.u32 2147483647, %v363
    %vm374 = vcmp.eq.f32.partialorder %v373, 8.507059e+37
    %v375 = vand.u32 %v363, 2147483648
    %v376 = vor.u32 1.1754944e-38, %v375
    %v377 = vsel %vm374, %v376, %v372
    %v378 = vmul.f32 1.0, %v377
    %v379 = vadd.f32 %v357, %v237
    %381 = vrot.lane.b32.xlu0 %v379, 64
    %v382 = vpop.permute.xlu0 %381
    %v384 = vmul.f32 %v378, %v382
    %386 = vrot.lane.b32.xlu0 %v384, 64
    %v387 = vpop.permute.xlu0 %386
    %v389 = vadd.f32 %v168, %v387
    %v390 = vtanh.pop %v389
    %v391 = vsub.f32 %v331, %v390
    %393 = vrot.lane.b32.xlu0 %v391, 96
    %v394 = vpop.permute.xlu0 %393
    %v396 = vmul.f32 %v378, %v394
    %398 = vrot.lane.b32.xlu0 %v396, 32
    %v399 = vpop.permute.xlu0 %398
    %v401 = vadd.f32 %v390, %v399
    %403 = vrot.lane.b32.xlu0 %v401, 64
    %v404 = vpop.permute.xlu0 %403
    %406 = vst.msk [vmem:[#allocation11 + $0x10] sm:$0xff] %vm192, %v404
    %v407 = vsel %vm192, %v404, 0
    %409 = vmatpush.msra.mxu0 0.0
    %410 = vmatpush.msra.mxu0 0.0
    %411 = vmatpush.msra.mxu0 0.0
    %412 = vmatpush.msra.mxu0 0.0
    %413 = vmatpush.msra.mxu0 0.0
    %414 = vmatpush.msra.mxu0 0.0
    %415 = vmatpush.msra.mxu0 0.0
    %416 = vmatpush.msra.mxu0 0.0
    %417 = vmatpush.msra.mxu0 0.0
    %418 = vmatpush.msra.mxu0 0.0
    %419 = vmatpush.msra.mxu0 0.0
    %420 = vmatpush.msra.mxu0 0.0
    %421 = vmatpush.msra.mxu0 %v188
    %422 = vmatpush.msra.mxu0 %v187
    %423 = vmatpush.msra.mxu0 %v186
    %424 = vmatpush.msra.mxu0 %v185
    %425 = vmatmul.f32.gmra.mxu0 %v407
    %v426 = vpop.f32.mrf.mxu0
    %v427 = vadd.f32 0.0, %v426
    %428 = vdwg.mxu0
    %v429 = vadd.f32 %v171, %v427
    %v430 = vxor.u32 %v429, 2147483648
    %v431 = vmul.f32 %v430, 1.442695
    %v432 = vpow.pop %v431
    %v433 = vadd.f32 %v432, 1.0
    %v434 = vrcp.pop %v433
    %v435 = vmul.f32 %v433, %v434
    %v436 = vsub.f32 1.0, %v435
    %v437 = vmul.f32 %v434, %v436
    %v438 = vadd.f32 %v434, %v437
    %vm439 = vweird.f32 %v433
    %vm440 = vweird.f32 %v434
    %vm441 = vmor %vm439, %vm440
    %v442 = vsel %vm441, %v434, %v438
    %v443 = vand.u32 2147483647, %v433
    %vm444 = vcmp.eq.f32.partialorder %v443, 8.507059e+37
    %v445 = vand.u32 %v433, 2147483648
    %v446 = vor.u32 1.1754944e-38, %v445
    %v447 = vsel %vm444, %v446, %v442
    %v448 = vmul.f32 1.0, %v447
    %v449 = vadd.f32 %v427, %v237
    %451 = vrot.lane.b32.xlu0 %v449, 64
    %v452 = vpop.permute.xlu0 %451
    %v454 = vmul.f32 %v448, %v452
    %456 = vrot.lane.b32.xlu0 %v454, 64
    %v457 = vpop.permute.xlu0 %456
    %v459 = vadd.f32 %v171, %v457
    %v460 = vtanh.pop %v459
    %v461 = vsub.f32 %v401, %v460
    %463 = vrot.lane.b32.xlu0 %v461, 96
    %v464 = vpop.permute.xlu0 %463
    %v466 = vmul.f32 %v448, %v464
    %468 = vrot.lane.b32.xlu0 %v466, 32
    %v469 = vpop.permute.xlu0 %468
    %v471 = vadd.f32 %v460, %v469
    %473 = vrot.lane.b32.xlu0 %v471, 64
    %v474 = vpop.permute.xlu0 %473
    %476 = vst.msk [vmem:[#allocation11 + $0x18] sm:$0xff] %vm192, %v474
    %v477 = vsel %vm192, %v474, 0
    %479 = vmatpush.msra.mxu0 0.0
    %480 = vmatpush.msra.mxu0 0.0
    %481 = vmatpush.msra.mxu0 0.0
    %482 = vmatpush.msra.mxu0 0.0
    %483 = vmatpush.msra.mxu0 0.0
    %484 = vmatpush.msra.mxu0 0.0
    %485 = vmatpush.msra.mxu0 0.0
    %486 = vmatpush.msra.mxu0 0.0
    %487 = vmatpush.msra.mxu0 0.0
    %488 = vmatpush.msra.mxu0 0.0
    %489 = vmatpush.msra.mxu0 0.0
    %490 = vmatpush.msra.mxu0 0.0
    %491 = vmatpush.msra.mxu0 %v188
    %492 = vmatpush.msra.mxu0 %v187
    %493 = vmatpush.msra.mxu0 %v186
    %494 = vmatpush.msra.mxu0 %v185
    %495 = vmatmul.f32.gmra.mxu0 %v477
    %v496 = vpop.f32.mrf.mxu0
    %v497 = vadd.f32 0.0, %v496
    %498 = vdwg.mxu0
    %v499 = vadd.f32 %v174, %v497
    %v500 = vxor.u32 %v499, 2147483648
    %v501 = vmul.f32 %v500, 1.442695
    %v502 = vpow.pop %v501
    %v503 = vadd.f32 %v502, 1.0
    %v504 = vrcp.pop %v503
    %v505 = vmul.f32 %v503, %v504
    %v506 = vsub.f32 1.0, %v505
    %v507 = vmul.f32 %v504, %v506
    %v508 = vadd.f32 %v504, %v507
    %vm509 = vweird.f32 %v503
    %vm510 = vweird.f32 %v504
    %vm511 = vmor %vm509, %vm510
    %v512 = vsel %vm511, %v504, %v508
    %v513 = vand.u32 2147483647, %v503
    %vm514 = vcmp.eq.f32.partialorder %v513, 8.507059e+37
    %v515 = vand.u32 %v503, 2147483648
    %v516 = vor.u32 1.1754944e-38, %v515
    %v517 = vsel %vm514, %v516, %v512
    %v518 = vmul.f32 1.0, %v517
    %v519 = vadd.f32 %v497, %v237
    %521 = vrot.lane.b32.xlu0 %v519, 64
    %v522 = vpop.permute.xlu0 %521
    %v524 = vmul.f32 %v518, %v522
    %526 = vrot.lane.b32.xlu0 %v524, 64
    %v527 = vpop.permute.xlu0 %526
    %v529 = vadd.f32 %v174, %v527
    %v530 = vtanh.pop %v529
    %v531 = vsub.f32 %v471, %v530
    %533 = vrot.lane.b32.xlu0 %v531, 96
    %v534 = vpop.permute.xlu0 %533
    %v536 = vmul.f32 %v518, %v534
    %538 = vrot.lane.b32.xlu0 %v536, 32
    %v539 = vpop.permute.xlu0 %538
    %v541 = vadd.f32 %v530, %v539
    %543 = vrot.lane.b32.xlu0 %v541, 64
    %v544 = vpop.permute.xlu0 %543
    %546 = vst.msk [vmem:[#allocation11 + $0x20] sm:$0xff] %vm192, %v544
    %v547 = vsel %vm192, %v544, 0
    %549 = vmatpush.msra.mxu0 0.0
    %550 = vmatpush.msra.mxu0 0.0
    %551 = vmatpush.msra.mxu0 0.0
    %552 = vmatpush.msra.mxu0 0.0
    %553 = vmatpush.msra.mxu0 0.0
    %554 = vmatpush.msra.mxu0 0.0
    %555 = vmatpush.msra.mxu0 0.0
    %556 = vmatpush.msra.mxu0 0.0
    %557 = vmatpush.msra.mxu0 0.0
    %558 = vmatpush.msra.mxu0 0.0
    %559 = vmatpush.msra.mxu0 0.0
    %560 = vmatpush.msra.mxu0 0.0
    %561 = vmatpush.msra.mxu0 %v188
    %562 = vmatpush.msra.mxu0 %v187
    %563 = vmatpush.msra.mxu0 %v186
    %564 = vmatpush.msra.mxu0 %v185
    %565 = vmatmul.f32.gmra.mxu0 %v547
    %v566 = vpop.f32.mrf.mxu0
    %v567 = vadd.f32 0.0, %v566
    %568 = vdwg.mxu0
    %v569 = vadd.f32 %v177, %v567
    %v570 = vxor.u32 %v569, 2147483648
    %v571 = vmul.f32 %v570, 1.442695
    %v572 = vpow.pop %v571
    %v573 = vadd.f32 %v572, 1.0
    %v574 = vrcp.pop %v573
    %v575 = vmul.f32 %v573, %v574
    %v576 = vsub.f32 1.0, %v575
    %v577 = vmul.f32 %v574, %v576
    %v578 = vadd.f32 %v574, %v577
    %vm579 = vweird.f32 %v573
    %vm580 = vweird.f32 %v574
    %vm581 = vmor %vm579, %vm580
    %v582 = vsel %vm581, %v574, %v578
    %v583 = vand.u32 2147483647, %v573
    %vm584 = vcmp.eq.f32.partialorder %v583, 8.507059e+37
    %v585 = vand.u32 %v573, 2147483648
    %v586 = vor.u32 1.1754944e-38, %v585
    %v587 = vsel %vm584, %v586, %v582
    %v588 = vmul.f32 1.0, %v587
    %v589 = vadd.f32 %v567, %v237
    %591 = vrot.lane.b32.xlu0 %v589, 64
    %v592 = vpop.permute.xlu0 %591
    %v594 = vmul.f32 %v588, %v592
    %596 = vrot.lane.b32.xlu0 %v594, 64
    %v597 = vpop.permute.xlu0 %596
    %v599 = vadd.f32 %v177, %v597
    %v600 = vtanh.pop %v599
    %v601 = vsub.f32 %v541, %v600
    %603 = vrot.lane.b32.xlu0 %v601, 96
    %v604 = vpop.permute.xlu0 %603
    %v606 = vmul.f32 %v588, %v604
    %608 = vrot.lane.b32.xlu0 %v606, 32
    %v609 = vpop.permute.xlu0 %608
    %v611 = vadd.f32 %v600, %v609
    %613 = vrot.lane.b32.xlu0 %v611, 64
    %v614 = vpop.permute.xlu0 %613
    %616 = vst.msk [vmem:[#allocation11 + $0x28] sm:$0xff] %vm192, %v614
    %v617 = vsel %vm192, %v614, 0
    %619 = vmatpush.msra.mxu0 0.0
    %620 = vmatpush.msra.mxu0 0.0
    %621 = vmatpush.msra.mxu0 0.0
    %622 = vmatpush.msra.mxu0 0.0
    %623 = vmatpush.msra.mxu0 0.0
    %624 = vmatpush.msra.mxu0 0.0
    %625 = vmatpush.msra.mxu0 0.0
    %626 = vmatpush.msra.mxu0 0.0
    %627 = vmatpush.msra.mxu0 0.0
    %628 = vmatpush.msra.mxu0 0.0
    %629 = vmatpush.msra.mxu0 0.0
    %630 = vmatpush.msra.mxu0 0.0
    %631 = vmatpush.msra.mxu0 %v188
    %632 = vmatpush.msra.mxu0 %v187
    %633 = vmatpush.msra.mxu0 %v186
    %634 = vmatpush.msra.mxu0 %v185
    %635 = vmatmul.f32.gmra.mxu0 %v617
    %v636 = vpop.f32.mrf.mxu0
    %v637 = vadd.f32 0.0, %v636
    %638 = vdwg.mxu0
    %v639 = vadd.f32 %v180, %v637
    %v640 = vxor.u32 %v639, 2147483648
    %v641 = vmul.f32 %v640, 1.442695
    %v642 = vpow.pop %v641
    %v643 = vadd.f32 %v642, 1.0
    %v644 = vrcp.pop %v643
    %v645 = vmul.f32 %v643, %v644
    %v646 = vsub.f32 1.0, %v645
    %v647 = vmul.f32 %v644, %v646
    %v648 = vadd.f32 %v644, %v647
    %vm649 = vweird.f32 %v643
    %vm650 = vweird.f32 %v644
    %vm651 = vmor %vm649, %vm650
    %v652 = vsel %vm651, %v644, %v648
    %v653 = vand.u32 2147483647, %v643
    %vm654 = vcmp.eq.f32.partialorder %v653, 8.507059e+37
    %v655 = vand.u32 %v643, 2147483648
    %v656 = vor.u32 1.1754944e-38, %v655
    %v657 = vsel %vm654, %v656, %v652
    %v658 = vmul.f32 1.0, %v657
    %v659 = vadd.f32 %v637, %v237
    %661 = vrot.lane.b32.xlu0 %v659, 64
    %v662 = vpop.permute.xlu0 %661
    %v664 = vmul.f32 %v658, %v662
    %666 = vrot.lane.b32.xlu0 %v664, 64
    %v667 = vpop.permute.xlu0 %666
    %v669 = vadd.f32 %v180, %v667
    %v670 = vtanh.pop %v669
    %v671 = vsub.f32 %v611, %v670
    %673 = vrot.lane.b32.xlu0 %v671, 96
    %v674 = vpop.permute.xlu0 %673
    %v676 = vmul.f32 %v658, %v674
    %678 = vrot.lane.b32.xlu0 %v676, 32
    %v679 = vpop.permute.xlu0 %678
    %v681 = vadd.f32 %v670, %v679
    %683 = vrot.lane.b32.xlu0 %v681, 64
    %v684 = vpop.permute.xlu0 %683
    %686 = vst.msk [vmem:[#allocation11 + $0x30] sm:$0xff] %vm192, %v684
    %v687 = vsel %vm192, %v684, 0
    %689 = vmatpush.msra.mxu0 0.0
    %690 = vmatpush.msra.mxu0 0.0
    %691 = vmatpush.msra.mxu0 0.0
    %692 = vmatpush.msra.mxu0 0.0
    %693 = vmatpush.msra.mxu0 0.0
    %694 = vmatpush.msra.mxu0 0.0
    %695 = vmatpush.msra.mxu0 0.0
    %696 = vmatpush.msra.mxu0 0.0
    %697 = vmatpush.msra.mxu0 0.0
    %698 = vmatpush.msra.mxu0 0.0
    %699 = vmatpush.msra.mxu0 0.0
    %700 = vmatpush.msra.mxu0 0.0
    %701 = vmatpush.msra.mxu0 %v188
    %702 = vmatpush.msra.mxu0 %v187
    %703 = vmatpush.msra.mxu0 %v186
    %704 = vmatpush.msra.mxu0 %v185
    %705 = vmatmul.f32.gmra.mxu0 %v687
    %v706 = vpop.f32.mrf.mxu0
    %v707 = vadd.f32 0.0, %v706
    %708 = vdwg.mxu0
    %v709 = vadd.f32 %v183, %v707
    %v710 = vxor.u32 %v709, 2147483648
    %v711 = vmul.f32 %v710, 1.442695
    %v712 = vpow.pop %v711
    %v713 = vadd.f32 %v712, 1.0
    %v714 = vrcp.pop %v713
    %v715 = vmul.f32 %v713, %v714
    %v716 = vsub.f32 1.0, %v715
    %v717 = vmul.f32 %v714, %v716
    %v718 = vadd.f32 %v714, %v717
    %vm719 = vweird.f32 %v713
    %vm720 = vweird.f32 %v714
    %vm721 = vmor %vm719, %vm720
    %v722 = vsel %vm721, %v714, %v718
    %v723 = vand.u32 2147483647, %v713
    %vm724 = vcmp.eq.f32.partialorder %v723, 8.507059e+37
    %v725 = vand.u32 %v713, 2147483648
    %v726 = vor.u32 1.1754944e-38, %v725
    %v727 = vsel %vm724, %v726, %v722
    %v728 = vmul.f32 1.0, %v727
    %v729 = vadd.f32 %v707, %v237
    %731 = vrot.lane.b32.xlu0 %v729, 64
    %v732 = vpop.permute.xlu0 %731
    %v734 = vmul.f32 %v728, %v732
    %736 = vrot.lane.b32.xlu0 %v734, 64
    %v737 = vpop.permute.xlu0 %736
    %v739 = vadd.f32 %v183, %v737
    %v740 = vtanh.pop %v739
    %v741 = vsub.f32 %v681, %v740
    %743 = vrot.lane.b32.xlu0 %v741, 96
    %v744 = vpop.permute.xlu0 %743
    %v746 = vmul.f32 %v728, %v744
    %748 = vrot.lane.b32.xlu0 %v746, 32
    %v749 = vpop.permute.xlu0 %748
    %v751 = vadd.f32 %v740, %v749
    %753 = vrot.lane.b32.xlu0 %v751, 64
    %v754 = vpop.permute.xlu0 %753
    %756 = vst.msk [vmem:[#allocation11 + $0x38] sm:$0xff] %vm192, %v754
    %v757 = vld [vmem:[#allocation11] sm:$0xff]
    %v758 = vld [vmem:[#allocation11 + $0x8] sm:$0xff]
    %v759 = vld [vmem:[#allocation11 + $0x10] sm:$0xff]
    %v760 = vld [vmem:[#allocation11 + $0x18] sm:$0xff]
    %v761 = vld [vmem:[#allocation11 + $0x20] sm:$0xff]
    %v762 = vld [vmem:[#allocation11 + $0x28] sm:$0xff]
    %v763 = vld [vmem:[#allocation11 + $0x30] sm:$0xff]
    %v764 = vld [vmem:[#allocation11 + $0x38] sm:$0xff]
    %v765 = vld [vmem:[#allocation10] sm:$0xff]
    %v766 = vld [vmem:[#allocation10 + $0x8] sm:$0xff]
    %v767 = vld [vmem:[#allocation10 + $0x10] sm:$0xff]
    %v768 = vld [vmem:[#allocation10 + $0x18] sm:$0xff]
    %v769 = vld [vmem:[%s6] sm:$0x1]
    %v771 = vperm.slane %v769, 0
    %v774 = vsel %vm192, %v757, 0
    %v777 = vsel %vm192, %v758, 0
    %v780 = vsel %vm192, %v759, 0
    %v783 = vsel %vm192, %v760, 0
    %v786 = vsel %vm192, %v761, 0
    %v789 = vsel %vm192, %v762, 0
    %v792 = vsel %vm192, %v763, 0
    %v795 = vsel %vm192, %v764, 0
    %797 = vmatpush.msra.mxu0 0.0
    %798 = vmatpush.msra.mxu0 0.0
    %799 = vmatpush.msra.mxu0 0.0
    %800 = vmatpush.msra.mxu0 0.0
    %801 = vmatpush.msra.mxu0 0.0
    %802 = vmatpush.msra.mxu0 0.0
    %803 = vmatpush.msra.mxu0 0.0
    %804 = vmatpush.msra.mxu0 0.0
    %805 = vmatpush.msra.mxu0 0.0
    %806 = vmatpush.msra.mxu0 0.0
    %807 = vmatpush.msra.mxu0 0.0
    %808 = vmatpush.msra.mxu0 0.0
    %809 = vmatpush.msra.mxu0 %v768
    %810 = vmatpush.msra.mxu0 %v767
    %811 = vmatpush.msra.mxu0 %v766
    %812 = vmatpush.msra.mxu0 %v765
    %813 = vmatmul.f32.gmra.mxu0 %v774
    %v814 = vpop.f32.mrf.mxu0
    %v815 = vadd.f32 %v771, %v814
    %816 = vmatmul.f32.gmra.mxu0 %v777
    %v817 = vpop.f32.mrf.mxu0
    %v818 = vadd.f32 %v771, %v817
    %819 = vmatmul.f32.gmra.mxu0 %v780
    %v820 = vpop.f32.mrf.mxu0
    %v821 = vadd.f32 %v771, %v820
    %822 = vmatmul.f32.gmra.mxu0 %v783
    %v823 = vpop.f32.mrf.mxu0
    %v824 = vadd.f32 %v771, %v823
    %825 = vmatmul.f32.gmra.mxu0 %v786
    %v826 = vpop.f32.mrf.mxu0
    %v827 = vadd.f32 %v771, %v826
    %828 = vmatmul.f32.gmra.mxu0 %v789
    %v829 = vpop.f32.mrf.mxu0
    %v830 = vadd.f32 %v771, %v829
    %831 = vmatmul.f32.gmra.mxu0 %v792
    %v832 = vpop.f32.mrf.mxu0
    %v833 = vadd.f32 %v771, %v832
    %834 = vmatmul.f32.gmra.mxu0 %v795
    %v835 = vpop.f32.mrf.mxu0
    %v836 = vadd.f32 %v771, %v835
    %837 = vdwg.mxu0
    %v838 = vmul.f32 %v815, 10.0
    %v839 = vmul.f32 %v818, 10.0
    %v840 = vmul.f32 %v821, 10.0
    %v841 = vmul.f32 %v824, 10.0
    %v842 = vmul.f32 %v827, 10.0
    %v843 = vmul.f32 %v830, 10.0
    %v844 = vmul.f32 %v833, 10.0
    %v845 = vmul.f32 %v836, 10.0
    %vm846 = vcmp.gt.f32.partialorder %v838, 20.0
    %vm847 = vcmp.gt.f32.partialorder %v839, 20.0
    %vm848 = vcmp.gt.f32.partialorder %v840, 20.0
    %vm849 = vcmp.gt.f32.partialorder %v841, 20.0
    %vm850 = vcmp.gt.f32.partialorder %v842, 20.0
    %vm851 = vcmp.gt.f32.partialorder %v843, 20.0
    %vm852 = vcmp.gt.f32.partialorder %v844, 20.0
    %vm853 = vcmp.gt.f32.partialorder %v845, 20.0
    %v854 = vmin.f32 %v838, 20.0
    %v855 = vmin.f32 %v839, 20.0
    %v856 = vmin.f32 %v840, 20.0
    %v857 = vmin.f32 %v841, 20.0
    %v858 = vmin.f32 %v842, 20.0
    %v859 = vmin.f32 %v843, 20.0
    %v860 = vmin.f32 %v844, 20.0
    %v861 = vmin.f32 %v845, 20.0
    %v862 = vmul.f32 %v854, 1.442695
    %v863 = vpow.pop %v862
    %v864 = vmul.f32 %v855, 1.442695
    %v865 = vpow.pop %v864
    %v866 = vmul.f32 %v856, 1.442695
    %v867 = vpow.pop %v866
    %v868 = vmul.f32 %v857, 1.442695
    %v869 = vpow.pop %v868
    %v870 = vmul.f32 %v858, 1.442695
    %v871 = vpow.pop %v870
    %v872 = vmul.f32 %v859, 1.442695
    %v873 = vpow.pop %v872
    %v874 = vmul.f32 %v860, 1.442695
    %v875 = vpow.pop %v874
    %v876 = vmul.f32 %v861, 1.442695
    %v877 = vpow.pop %v876
    %v878 = vadd.f32 %v863, 1.0
    %v879 = vlog2.pop %v878
    %v880 = vmul.f32 %v879, 0.6931472
    %v881 = vmul.f32 -0.5, %v863
    %v882 = vadd.f32 %v881, 1.0
    %v883 = vmul.f32 %v882, %v863
    %v884 = vand.u32 2147483647, %v863
    %vm885 = vcmp.lt.f32.partialorder %v884, 0.0004427343
    %v886 = vsel %vm885, %v883, %v880
    %v887 = vadd.f32 %v865, 1.0
    %v888 = vlog2.pop %v887
    %v889 = vmul.f32 %v888, 0.6931472
    %v890 = vmul.f32 -0.5, %v865
    %v891 = vadd.f32 %v890, 1.0
    %v892 = vmul.f32 %v891, %v865
    %v893 = vand.u32 2147483647, %v865
    %vm894 = vcmp.lt.f32.partialorder %v893, 0.0004427343
    %v895 = vsel %vm894, %v892, %v889
    %v896 = vadd.f32 %v867, 1.0
    %v897 = vlog2.pop %v896
    %v898 = vmul.f32 %v897, 0.6931472
    %v899 = vmul.f32 -0.5, %v867
    %v900 = vadd.f32 %v899, 1.0
    %v901 = vmul.f32 %v900, %v867
    %v902 = vand.u32 2147483647, %v867
    %vm903 = vcmp.lt.f32.partialorder %v902, 0.0004427343
    %v904 = vsel %vm903, %v901, %v898
    %v905 = vadd.f32 %v869, 1.0
    %v906 = vlog2.pop %v905
    %v907 = vmul.f32 %v906, 0.6931472
    %v908 = vmul.f32 -0.5, %v869
    %v909 = vadd.f32 %v908, 1.0
    %v910 = vmul.f32 %v909, %v869
    %v911 = vand.u32 2147483647, %v869
    %vm912 = vcmp.lt.f32.partialorder %v911, 0.0004427343
    %v913 = vsel %vm912, %v910, %v907
    %v914 = vadd.f32 %v871, 1.0
    %v915 = vlog2.pop %v914
    %v916 = vmul.f32 %v915, 0.6931472
    %v917 = vmul.f32 -0.5, %v871
    %v918 = vadd.f32 %v917, 1.0
    %v919 = vmul.f32 %v918, %v871
    %v920 = vand.u32 2147483647, %v871
    %vm921 = vcmp.lt.f32.partialorder %v920, 0.0004427343
    %v922 = vsel %vm921, %v919, %v916
    %v923 = vadd.f32 %v873, 1.0
    %v924 = vlog2.pop %v923
    %v925 = vmul.f32 %v924, 0.6931472
    %v926 = vmul.f32 -0.5, %v873
    %v927 = vadd.f32 %v926, 1.0
    %v928 = vmul.f32 %v927, %v873
    %v929 = vand.u32 2147483647, %v873
    %vm930 = vcmp.lt.f32.partialorder %v929, 0.0004427343
    %v931 = vsel %vm930, %v928, %v925
    %v932 = vadd.f32 %v875, 1.0
    %v933 = vlog2.pop %v932
    %v934 = vmul.f32 %v933, 0.6931472
    %v935 = vmul.f32 -0.5, %v875
    %v936 = vadd.f32 %v935, 1.0
    %v937 = vmul.f32 %v936, %v875
    %v938 = vand.u32 2147483647, %v875
    %vm939 = vcmp.lt.f32.partialorder %v938, 0.0004427343
    %v940 = vsel %vm939, %v937, %v934
    %v941 = vadd.f32 %v877, 1.0
    %v942 = vlog2.pop %v941
    %v943 = vmul.f32 %v942, 0.6931472
    %v944 = vmul.f32 -0.5, %v877
    %v945 = vadd.f32 %v944, 1.0
    %v946 = vmul.f32 %v945, %v877
    %v947 = vand.u32 2147483647, %v877
    %vm948 = vcmp.lt.f32.partialorder %v947, 0.0004427343
    %v949 = vsel %vm948, %v946, %v943
    %v950 = vrcp.pop 10.0
    %v951 = vmul.f32 10.0, %v950
    %v952 = vsub.f32 1.0, %v951
    %v953 = vmul.f32 %v950, %v952
    %v954 = vadd.f32 %v950, %v953
    %vm955 = vweird.f32 %v950
    %v956 = vsel %vm955, %v950, %v954
    %v957 = vmul.f32 %v886, %v956
    %v958 = vmul.f32 %v895, %v956
    %v959 = vmul.f32 %v904, %v956
    %v960 = vmul.f32 %v913, %v956
    %v961 = vmul.f32 %v922, %v956
    %v962 = vmul.f32 %v931, %v956
    %v963 = vmul.f32 %v940, %v956
    %v964 = vmul.f32 %v949, %v956
    %v965 = vsel %vm846, %v815, %v957
    %v966 = vsel %vm847, %v818, %v958
    %v967 = vsel %vm848, %v821, %v959
    %v968 = vsel %vm849, %v824, %v960
    %v969 = vsel %vm850, %v827, %v961
    %v970 = vsel %vm851, %v830, %v962
    %v971 = vsel %vm852, %v833, %v963
    %v972 = vsel %vm853, %v836, %v964
    %973 = vst [vmem:[%s7] sm:$0xff] %v965
    %974 = vst [vmem:[%s7 + $0x8] sm:$0xff] %v966
    %975 = vst [vmem:[%s7 + $0x10] sm:$0xff] %v967
    %976 = vst [vmem:[%s7 + $0x18] sm:$0xff] %v968
    %977 = vst [vmem:[%s7 + $0x20] sm:$0xff] %v969
    %978 = vst [vmem:[%s7 + $0x28] sm:$0xff] %v970
    %979 = vst [vmem:[%s7 + $0x30] sm:$0xff] %v971
    %980 = vst [vmem:[%s7 + $0x38] sm:$0xff] %v972
    // Predicated region
    $region50: #{forward.1} parent=1 // pred_check
      _
    $region51: #{forward.1} parent=1 // pred_check_branch
      %982 = sbr.rel (0) target = $region53
    $region52: #{forward.1} parent=1 // pred_region
      _
    $region53: #{forward.1} parent=1 // pred_fallthru
      _
    // Predicated region
    $region54: #{forward.1} parent=1 // pred_check
      _
    $region55: #{forward.1} parent=1 // pred_check_branch
      %984 = sbr.rel (0) target = $region57
    $region56: #{forward.1} parent=1 // pred_region
      %986 = vsyncadd [#allocation4], 0
      %s987 = sshll.u32 [#allocation11], 4
      %s988 = int_to_ptr.vmem [resolvable:$true] %s987
      %s989 = sshll.u32 %s8, 4
      %s990 = int_to_ptr.hbm [resolvable:$true] %s989
      %995 = dma.vmem_to_hbm [thread:$0]  %s988, 1024, %s990, [#allocation4], 128, 128, 8
    $region57: #{forward.1} parent=1 // pred_fallthru
      _
    // Predicated region
    $region58: #{forward.1} parent=1 // pred_check
      _
    $region59: #{forward.1} parent=1 // pred_check_branch
      %997 = sbr.rel (0) target = $region61
    $region60: #{forward.1} parent=1 // pred_region
      _
    $region61: #{forward.1} parent=1 // pred_fallthru
      _
    // Predicated region
    $region62: #{forward.1} parent=1 // pred_check
      _
    $region63: #{forward.1} parent=1 // pred_check_branch
      %999 = sbr.rel (0) target = $region65
    $region64: #{forward.1} parent=1 // pred_region
      %1001 = dma.done [#allocation4], 1024
    $region65: #{forward.1} parent=1 // pred_fallthru
      _
    %1002 = vsyncpa [#allocation3], 1
    %1003 = vsyncpa [#allocation6], 1
    %1004 = vsyncpa [#allocation9], 1
    %1005 = vsyncpa [#allocation4], 1

</llo_original>
